<compile_context>
chip_gen: v7x
topology: tpu7x:2x2x1
jax: 0.10.0
libtpu: 0.0.40
codegen_flags: <defaults>
</compile_context>

<pallas_src>
import jax
import jax.numpy as jnp
from jax.experimental import pallas as pl
from jax.experimental.pallas import tpu as pltpu

_LANES = 128
_MAX_BLOCK_ROWS = 8192   # 8192 x 128 f32 = 4 MiB per block buffer
_MIN_SPLIT_ROWS = 512    # only split a single-block slab if each half >= this


def _silu_kernel(x_ref, o_ref):
    # SiLU: x * sigmoid(x). The PyTorch spec's `x * nn.Sigmoid(x)` is the
    # standard SiLU forward. f32 math regardless of storage dtype so bf16
    # inputs get the bandwidth win without relying on bf16 VALU (v5e).
    x = x_ref[...].astype(jnp.float32)
    sig = pl.reciprocal(1.0 + jnp.exp(-x), approx=False)
    o_ref[...] = (x * sig).astype(o_ref.dtype)


def _round_up(n, m):
    return ((n + m - 1) // m) * m


def silu(x):
    orig_shape = x.shape
    orig_dtype = x.dtype
    total = x.size
    itemsize = jnp.dtype(orig_dtype).itemsize
    # Sublane packing multiple: 8 for 4-byte, 16 for 2-byte, 32 for 1-byte.
    sublane = max(8, 32 // itemsize)

    flat = x.reshape(-1)

    # Lane-dense (rows, 128) view. Pad only when total is not a multiple of
    # 128 (silu(0) == 0; the tail is sliced off below).
    rows = pl.cdiv(total, _LANES)
    padded = rows * _LANES
    if padded != total:
        flat = jnp.pad(flat, (0, padded - total))
    x2d = flat.reshape(rows, _LANES)

    # Block-row selection.
    if rows <= _MAX_BLOCK_ROWS:
        if rows >= 2 * _MIN_SPLIT_ROWS:
            # Exactly 2 roughly-equal steps: overlaps DMA with compute and
            # lets v7x megacore shard the "parallel" axis across both TCs.
            block_rows = _round_up(pl.cdiv(rows, 2), sublane)
        else:
            # Tiny slab: one step, block == full array dims (always legal).
            block_rows = rows
    else:
        block_rows = _MAX_BLOCK_ROWS

    grid = (pl.cdiv(rows, block_rows),)

    cost = pl.CostEstimate(
        flops=4 * padded,
        transcendentals=padded,
        bytes_accessed=2 * padded * itemsize,
    )

    out2d = pl.pallas_call(
        _silu_kernel,
        out_shape=jax.ShapeDtypeStruct((rows, _LANES), orig_dtype),
        grid_spec=pltpu.PrefetchScalarGridSpec(
            num_scalar_prefetch=0,
            grid=grid,
            in_specs=[pl.BlockSpec((block_rows, _LANES), lambda i: (i, 0))],
            out_specs=pl.BlockSpec((block_rows, _LANES), lambda i: (i, 0)),
        ),
        compiler_params=pltpu.CompilerParams(
            dimension_semantics=("parallel",),
            vmem_limit_bytes=48 * 1024 * 1024,
        ),
        cost_estimate=cost,
    )(x2d)

    out = out2d.reshape(-1)
    if padded != total:
        out = out[:total]
    return out.reshape(orig_shape)


if __name__ == "__main__":
    key = jax.random.PRNGKey(0)
    x = jax.random.normal(key, (2, 4, 16, 16), jnp.float32)   # PyTorch NCHW shape

    out = silu(x)
    out = jax.block_until_ready(out)

    ref = x * jax.nn.sigmoid(x)
    assert out.shape == ref.shape
    if not bool(jnp.allclose(out, ref, rtol=1e-5, atol=1e-5)):
        raise ValueError("Pallas SiLU result does not match JAX reference")
    print("KERNEL_OK")
</pallas_src>

<mosaic_0001>
module attributes {stable_mosaic.version = 11 : i64} {
  func.func @_silu_kernel(%arg0: i32, %arg1: memref<16x128xf32, #tpu.memory_space<vmem>>, %arg2: memref<16x128xf32, #tpu.memory_space<vmem>>) attributes {dimension_semantics = [#tpu.dimension_semantics<parallel>], iteration_bounds = array<i64: 1>, scalar_prefetch = 0 : i64, scratch_operands = 0 : i64, tpu.core_type = #tpu.core_type<tc>, window_params = [{transform_indices = @transform_0, window_bounds = array<i64: 16, 128>}, {transform_indices = @transform_1, window_bounds = array<i64: 16, 128>}]} {
    %c0 = arith.constant 0 : index
    %c0_0 = arith.constant 0 : index
    %0 = vector.load %arg1[%c0, %c0_0] : memref<16x128xf32, #tpu.memory_space<vmem>>, vector<16x128xf32>
    %cst = arith.constant 0.000000e+00 : f32
    %1 = vector.broadcast %cst : f32 to vector<16x128xf32>
    %2 = arith.subf %1, %0 : vector<16x128xf32>
    %3 = math.exp %2 : vector<16x128xf32>
    %cst_1 = arith.constant 1.000000e+00 : f32
    %4 = vector.broadcast %cst_1 : f32 to vector<16x128xf32>
    %5 = arith.addf %4, %3 : vector<16x128xf32>
    %6 = tpu.reciprocal %5 : vector<16x128xf32> -> vector<16x128xf32>
    %7 = arith.mulf %0, %6 : vector<16x128xf32>
    %c0_2 = arith.constant 0 : index
    %c0_3 = arith.constant 0 : index
    %8 = vector.load %arg2[%c0_2, %c0_3] : memref<16x128xf32, #tpu.memory_space<vmem>>, vector<16x128xf32>
    tpu.vector_store %arg2[%c0_2, %c0_3], %7 {strides = array<i32>} : memref<16x128xf32, #tpu.memory_space<vmem>>, vector<16x128xf32>,
    return
  }
  func.func @transform_0(%arg0: i32) -> (i32, i32) {
    %c0_i32 = arith.constant 0 : i32
    %c0_i32_0 = arith.constant 0 : i32
    return %arg0, %c0_i32 : i32, i32
  }
  func.func @transform_1(%arg0: i32) -> (i32, i32) {
    %c0_i32 = arith.constant 0 : i32
    %c0_i32_0 = arith.constant 0 : i32
    return %arg0, %c0_i32 : i32, i32
  }
}

</mosaic_0001>

<llo_original>
// kernel: tpu_custom_call.1
$region0: #{tpu_custom_call.1}
  #allocation0 [shape = 'u32[]', space=smem, size = 0x4, offset = 0x4, fixed_abs, tag = 'smem constant byte address 0x4 - core index']
  #allocation1 [shape = 'u32[144,128]{1,0:T(1,128)}', space=vmem, size = 0x12000, scoped, tag = 'internal scratch']
  %s0 = inlined_call_operand.hbm [shape: f32[16,128], index: 0, kind: input, shape index: {}]
  %s1 = inlined_call_operand.hbm [shape: f32[16,128], index: 1, kind: output, shape index: {}]
  %s2 = sld [smem:[#allocation0]]
  $region18: #{tpu_custom_call.1} parent=0
    _
  %s4 = ssub.s32 1, %s2
  %s5 = scalar_select 0, %s4, %s2
  $region1: #{tpu_custom_call.1} parent=0
    #allocation2 [shape = 'u8[8192]{0}', space=vmem, size = 0x2000, scoped, tag = 'input window, operand 0, single buffered']
    #allocation3 [shape = 's32[1]{0}', space=sflag, size = 0x4, scoped, tag = 'scoped memory for tpu_custom_call.1']
    #allocation4 [shape = 's32[1]{0}', space=sflag, size = 0x4, scoped, tag = 'scoped memory for tpu_custom_call.1']
    #allocation5 [shape = 'u8[8192]{0}', space=vmem, size = 0x2000, scoped, tag = 'output window, operand 0, single buffered']
    %6 = vsyncpa [#allocation3], 0
    %7 = vsyncpa [#allocation4], 0
    // Predicated region
    $region2: #{tpu_custom_call.1} parent=1 // pred_check
      _
    $region3: #{tpu_custom_call.1} parent=1 // pred_check_branch
      %9 = sbr.rel (0) target = $region5
    $region4: #{tpu_custom_call.1} parent=1 // pred_region
      %s11 = ssub.s32 256, 256
      %12 = vsyncadd [#allocation3], %s11
      %s13 = sshll.u32 [#allocation2], 4
      %s14 = int_to_ptr.vmem [resolvable:$true] %s13
      %19 = dma.hbm_to_vmem [thread:$0]  %s0, 256, %s14, [#allocation3], 128, 128, 8
    $region5: #{tpu_custom_call.1} parent=1 // pred_fallthru
      _
    // Predicated region
    $region6: #{tpu_custom_call.1} parent=1 // pred_check
      _
    $region7: #{tpu_custom_call.1} parent=1 // pred_check_branch
      %21 = sbr.rel (0) target = $region9
    $region8: #{tpu_custom_call.1} parent=1 // pred_region
      %22 = dma.done [#allocation3], 256
    $region9: #{tpu_custom_call.1} parent=1 // pred_fallthru
      _
    %v23 = vld [vmem:[#allocation2] sm:$0xff]
    %v24 = vld [vmem:[#allocation2 + $0x8] sm:$0xff]
    %v25 = vsub.f32 0.0, %v23
    %v26 = vsub.f32 0.0, %v24
    %v27 = vmul.f32 %v25, 1.442695
    %v28 = vpow.pop %v27
    %v29 = vmul.f32 %v26, 1.442695
    %v30 = vpow.pop %v29
    %v31 = vadd.f32 %v28, 1.0
    %v32 = vadd.f32 %v30, 1.0
    %v33 = vrcp.pop %v31
    %v34 = vrcp.pop %v32
    %v35 = vmul.f32 %v23, %v33
    %v36 = vmul.f32 %v24, %v34
    %37 = vst [vmem:[#allocation5] sm:$0xff] %v35
    %38 = vst [vmem:[#allocation5 + $0x8] sm:$0xff] %v36
    // Predicated region
    $region10: #{tpu_custom_call.1} parent=1 // pred_check
      _
    $region11: #{tpu_custom_call.1} parent=1 // pred_check_branch
      %40 = sbr.rel (0) target = $region13
    $region12: #{tpu_custom_call.1} parent=1 // pred_region
      %s42 = ssub.s32 256, 256
      %43 = vsyncadd [#allocation4], %s42
      %s44 = sshll.u32 [#allocation5], 4
      %s45 = int_to_ptr.vmem [resolvable:$true] %s44
      %50 = dma.vmem_to_hbm [thread:$0]  %s45, 256, %s1, [#allocation4], 128, 128, 8
    $region13: #{tpu_custom_call.1} parent=1 // pred_fallthru
      _
    // Predicated region
    $region14: #{tpu_custom_call.1} parent=1 // pred_check
      _
    $region15: #{tpu_custom_call.1} parent=1 // pred_check_branch
      %52 = sbr.rel (0) target = $region17
    $region16: #{tpu_custom_call.1} parent=1 // pred_region
      %53 = dma.done [#allocation4], 256
    $region17: #{tpu_custom_call.1} parent=1 // pred_fallthru
      _
    %54 = vsyncpa [#allocation3], 1
    %55 = vsyncpa [#allocation4], 1

</llo_original>
